<compile_context>
chip_gen: v7x
topology: tpu7x:2x2x1
jax: 0.10.0
libtpu: 0.0.40
codegen_flags: <defaults>
</compile_context>

<pallas_src>
import jax
import jax.numpy as jnp
from jax.experimental import pallas as pl
from jax.experimental.pallas import tpu as pltpu


def _channel_softmax_kernel(x_ref, o_ref):
    """Row-wise softmax over the last (lane) axis of a (tm, HW) tile."""
    x = x_ref[...].astype(jnp.float32)
    m = jnp.max(x, axis=-1, keepdims=True)
    e = jnp.exp(x - m)
    s = jnp.sum(e, axis=-1, keepdims=True)
    inv = pl.reciprocal(s, approx=True)          # EUP slot, effectively free
    o_ref[...] = (e * inv).astype(o_ref.dtype)


def _sublane_pack(dtype):
    # Sub-32-bit dtypes pack along sublanes: 8 rows per vreg tile for 32-bit,
    # 16 for bf16/fp16, 32 for int8/fp8.
    return max(8, 32 // jnp.dtype(dtype).itemsize)


def channel_norm(featmap):
    """featmap: (n, c, h, w) -> softmax over flattened spatial dim, returns (n, c, h*w)."""
    n, c, h, w = featmap.shape
    hw = h * w
    M = n * c
    dtype = featmap.dtype
    itemsize = jnp.dtype(dtype).itemsize
    pack = _sublane_pack(dtype)

    x = featmap.reshape(M, hw)

    # --- Lane (last) axis: keep it >= 128 and a multiple of 128 so stores are
    # full-width `vst` instead of masked partial stores. Only pads when h*w is
    # not already a multiple of 128; the pad value underflows to 0 in exp(), so
    # the softmax over the real columns is unchanged.
    hw_p = ((hw + 127) // 128) * 128
    if hw_p != hw:
        # TODO(synk): this pad (+ slice below) costs one extra HBM pass; only taken
        # when h*w is not a multiple of 128 (not the common case).
        pad_val = jnp.finfo(dtype).min if jnp.issubdtype(dtype, jnp.floating) else 0
        x = jnp.pad(x, ((0, 0), (0, hw_p - hw)), constant_values=pad_val)

    # --- Row-tile selection: generation-aware VMEM budget.
    # Pipelined footprint per row ~ (3 input buffers + 2 output buffers) * itemsize
    # plus ~2 block-sized f32 intermediates inside the kernel body.
    try:
        vmem_cap = pltpu.get_tpu_info().vmem_capacity_bytes
    except Exception:
        vmem_cap = 64 << 20                      # conservative: v7x per-TensorCore VMEM
    budget = vmem_cap // 3                       # leave ample headroom vs. physical VMEM
    bytes_per_row = hw_p * (3 * itemsize + 2 * itemsize + 2 * 4)
    tm_vmem = max(pack, (budget // bytes_per_row) // pack * pack)

    if M <= pack:
        # Full-extent row block (exempt from the (pack, 128) divisibility rule).
        tm = M
    else:
        # Never collapse to a single grid step when there are enough rows:
        # >= 2 (ideally >= 4) steps enables v7x megacore sharding + DMA/compute overlap.
        if M >= 8 * pack:
            min_steps = 4
        elif M >= 2 * pack:
            min_steps = 2
        else:
            min_steps = 1
        tm_parallel = max(pack, (M // min_steps) // pack * pack)
        tm = min(tm_vmem, tm_parallel)

    grid_steps = (M + tm - 1) // tm              # ragged last block handled by Pallas masking

    # Deepen input prefetch when the grid is short so first/last DMAs are better hidden.
    if 2 <= grid_steps <= 4:
        in_spec = pl.BlockSpec((tm, hw_p), lambda i: (i, 0),
                               pipeline_mode=pl.Buffered(3))
    else:
        in_spec = pl.BlockSpec((tm, hw_p), lambda i: (i, 0))

    footprint = tm * bytes_per_row
    vmem_limit = int(min(vmem_cap * 3 // 4, max(32 << 20, 2 * footprint)))

    out = pl.pallas_call(
        _channel_softmax_kernel,
        grid=(grid_steps,),
        in_specs=[in_spec],
        out_specs=pl.BlockSpec((tm, hw_p), lambda i: (i, 0)),
        out_shape=jax.ShapeDtypeStruct((M, hw_p), dtype),
        compiler_params=pltpu.CompilerParams(
            dimension_semantics=("parallel",),
            vmem_limit_bytes=vmem_limit),
    )(x)

    if hw_p != hw:
        out = out[:, :hw]
    return out.reshape(n, c, hw)


if __name__ == "__main__":
    key = jax.random.PRNGKey(0)
    n, c, h, w = 2, 4, 16, 16
    featmap = jax.random.normal(key, (n, c, h, w), jnp.float32)

    out = channel_norm(featmap)
    out = jax.block_until_ready(out)

    # Sanity check against the pure-JAX reference (softmax over flattened spatial dim).
    ref = jax.nn.softmax(featmap.reshape(n, c, h * w), axis=-1)
    assert out.shape == (n, c, h * w)
    assert bool(jnp.allclose(out, ref, rtol=1e-3, atol=1e-3)), "mismatch vs reference softmax"

    print("KERNEL_OK")
</pallas_src>

<mosaic_0001>
module attributes {stable_mosaic.version = 11 : i64} {
  func.func @_channel_softmax_kernel(%arg0: i32, %arg1: memref<8x256xf32, #tpu.memory_space<vmem>>, %arg2: memref<8x256xf32, #tpu.memory_space<vmem>>) attributes {dimension_semantics = [#tpu.dimension_semantics<parallel>], iteration_bounds = array<i64: 1>, scalar_prefetch = 0 : i64, scratch_operands = 0 : i64, tpu.core_type = #tpu.core_type<tc>, window_params = [{transform_indices = @transform_0, window_bounds = array<i64: 8, 256>}, {transform_indices = @transform_1, window_bounds = array<i64: 8, 256>}]} {
    %c0 = arith.constant 0 : index
    %c0_0 = arith.constant 0 : index
    %0 = vector.load %arg1[%c0, %c0_0] : memref<8x256xf32, #tpu.memory_space<vmem>>, vector<8x256xf32>
    %cst = arith.constant dense<0xFF800000> : vector<8xf32>
    %1 = vector.multi_reduction <maximumf>, %0, %cst [1] : vector<8x256xf32> to vector<8xf32>
    %2 = vector.shape_cast %1 : vector<8xf32> to vector<8x1xf32>
    %3 = vector.broadcast %2 : vector<8x1xf32> to vector<8x256xf32>
    %4 = arith.subf %0, %3 : vector<8x256xf32>
    %5 = math.exp %4 : vector<8x256xf32>
    %cst_1 = arith.constant dense<0.000000e+00> : vector<8xf32>
    %6 = vector.multi_reduction <add>, %5, %cst_1 [1] : vector<8x256xf32> to vector<8xf32>
    %7 = vector.shape_cast %6 : vector<8xf32> to vector<8x1xf32>
    %8 = tpu.reciprocal %7 {approx = true} : vector<8x1xf32> -> vector<8x1xf32>
    %9 = vector.broadcast %8 : vector<8x1xf32> to vector<8x256xf32>
    %10 = arith.mulf %5, %9 : vector<8x256xf32>
    %c0_2 = arith.constant 0 : index
    %c0_3 = arith.constant 0 : index
    %11 = vector.load %arg2[%c0_2, %c0_3] : memref<8x256xf32, #tpu.memory_space<vmem>>, vector<8x256xf32>
    tpu.vector_store %arg2[%c0_2, %c0_3], %10 {strides = array<i32>} : memref<8x256xf32, #tpu.memory_space<vmem>>, vector<8x256xf32>,
    return
  }
  func.func @transform_0(%arg0: i32) -> (i32, i32) {
    %c0_i32 = arith.constant 0 : i32
    %c0_i32_0 = arith.constant 0 : i32
    return %arg0, %c0_i32 : i32, i32
  }
  func.func @transform_1(%arg0: i32) -> (i32, i32) {
    %c0_i32 = arith.constant 0 : i32
    %c0_i32_0 = arith.constant 0 : i32
    return %arg0, %c0_i32 : i32, i32
  }
}

</mosaic_0001>

<llo_original>
// kernel: tpu_custom_call.1
$region0: #{tpu_custom_call.1}
  #allocation0 [shape = 'u32[]', space=smem, size = 0x4, offset = 0x4, fixed_abs, tag = 'smem constant byte address 0x4 - core index']
  #allocation1 [shape = 'u32[144,128]{1,0:T(1,128)}', space=vmem, size = 0x12000, scoped, tag = 'internal scratch']
  %s0 = inlined_call_operand.hbm [shape: f32[8,256], index: 0, kind: input, shape index: {}]
  %s1 = inlined_call_operand.hbm [shape: f32[8,256], index: 1, kind: output, shape index: {}]
  %s2 = sld [smem:[#allocation0]]
  $region18: #{tpu_custom_call.1} parent=0
    _
  %s4 = ssub.s32 1, %s2
  %s5 = scalar_select 0, %s4, %s2
  $region1: #{tpu_custom_call.1} parent=0
    #allocation2 [shape = 'u8[8192]{0}', space=vmem, size = 0x2000, scoped, tag = 'input window, operand 0, single buffered']
    #allocation3 [shape = 's32[1]{0}', space=sflag, size = 0x4, scoped, tag = 'scoped memory for tpu_custom_call.1']
    #allocation4 [shape = 's32[1]{0}', space=sflag, size = 0x4, scoped, tag = 'scoped memory for tpu_custom_call.1']
    #allocation5 [shape = 'u8[8192]{0}', space=vmem, size = 0x2000, scoped, tag = 'output window, operand 0, single buffered']
    %6 = vsyncpa [#allocation3], 0
    %7 = vsyncpa [#allocation4], 0
    // Predicated region
    $region2: #{tpu_custom_call.1} parent=1 // pred_check
      _
    $region3: #{tpu_custom_call.1} parent=1 // pred_check_branch
      %9 = sbr.rel (0) target = $region5
    $region4: #{tpu_custom_call.1} parent=1 // pred_region
      %s11 = ssub.s32 256, 256
      %12 = vsyncadd [#allocation3], %s11
      %s14 = sshll.u32 [#allocation2], 4
      %s15 = int_to_ptr.vmem [resolvable:$true] %s14
      %17 = dma.hbm_to_vmem [thread:$0]  %s0, 256, %s15, [#allocation3]
    $region5: #{tpu_custom_call.1} parent=1 // pred_fallthru
      _
    // Predicated region
    $region6: #{tpu_custom_call.1} parent=1 // pred_check
      _
    $region7: #{tpu_custom_call.1} parent=1 // pred_check_branch
      %19 = sbr.rel (0) target = $region9
    $region8: #{tpu_custom_call.1} parent=1 // pred_region
      %20 = dma.done [#allocation3], 256
    $region9: #{tpu_custom_call.1} parent=1 // pred_fallthru
      _
    %v21 = vld [vmem:[#allocation2] sm:$0xff]
    %v22 = vld [vmem:[#allocation2 + $0x8] sm:$0xff]
    %v23 = vmax.f32 %v21, %v22
    %24 = vmax.xlane.f32.xlu0 %v23
    %v25 = vpop.xlane.xlu0 %24
    %v26 = vsub.f32 %v21, %v25
    %v27 = vsub.f32 %v22, %v25
    %v28 = vmul.f32 %v26, 1.442695
    %v29 = vpow.pop %v28
    %v30 = vmul.f32 %v27, 1.442695
    %v31 = vpow.pop %v30
    %v32 = vadd.f32 %v29, %v31
    %33 = vadd.xlane.f32.xlu0 %v32
    %v34 = vpop.xlane.xlu0 %33
    %v35 = vrcp.pop %v34
    %v36 = vmul.f32 %v29, %v35
    %v37 = vmul.f32 %v31, %v35
    %38 = vst [vmem:[#allocation5] sm:$0xff] %v36
    %39 = vst [vmem:[#allocation5 + $0x8] sm:$0xff] %v37
    // Predicated region
    $region10: #{tpu_custom_call.1} parent=1 // pred_check
      _
    $region11: #{tpu_custom_call.1} parent=1 // pred_check_branch
      %41 = sbr.rel (0) target = $region13
    $region12: #{tpu_custom_call.1} parent=1 // pred_region
      %s43 = ssub.s32 256, 256
      %44 = vsyncadd [#allocation4], %s43
      %s46 = sshll.u32 [#allocation5], 4
      %s47 = int_to_ptr.vmem [resolvable:$true] %s46
      %49 = dma.vmem_to_hbm [thread:$0]  %s47, 256, %s1, [#allocation4]
    $region13: #{tpu_custom_call.1} parent=1 // pred_fallthru
      _
    // Predicated region
    $region14: #{tpu_custom_call.1} parent=1 // pred_check
      _
    $region15: #{tpu_custom_call.1} parent=1 // pred_check_branch
      %51 = sbr.rel (0) target = $region17
    $region16: #{tpu_custom_call.1} parent=1 // pred_region
      %52 = dma.done [#allocation4], 256
    $region17: #{tpu_custom_call.1} parent=1 // pred_fallthru
      _
    %53 = vsyncpa [#allocation3], 1
    %54 = vsyncpa [#allocation4], 1

</llo_original>
